<compile_context>
chip_gen: v5e
topology: v5e:2x2
jax: 0.10.0
libtpu: 0.0.40
codegen_flags: <defaults>
</compile_context>

<pallas_src>
import functools

import jax
import jax.numpy as jnp
from jax.experimental import pallas as pl
from jax.experimental.pallas import tpu as pltpu


# ---------------------------------------------------------------------------
# Pallas kernel: one bf16 matmul per (1, TS, H) tile + masked running max
# ---------------------------------------------------------------------------
def _head_kernel(ids_ref, am_ref, x_ref, w_ref, b_ref, o_ref, *, seq_len, seq_tile):
    s = pl.program_id(1)

    # Output block index is constant across the s axis -> it stays resident in
    # VMEM and acts as the running-max accumulator.  Initialize on first tile.
    @pl.when(s == 0)
    def _():
        o_ref[...] = jnp.full_like(o_ref, -jnp.inf)

    # (TS, H) bf16 @ (H, L) bf16 -> (TS, L) f32 on the MXU.
    scores = jnp.dot(x_ref[0], w_ref[...], preferred_element_type=jnp.float32)

    # mask = (input_ids != 2) & attention_mask, applied post-matmul (linear),
    # bias added AFTER the mask so fully-masked rows contribute exactly the
    # bias to the max (same as the PyTorch forward).
    mask = jnp.logical_and(ids_ref[0] != 2, am_ref[0] != 0).astype(jnp.float32)  # (TS, 1)
    scores = scores * mask + b_ref[...]                                          # (TS, L)

    # Exclude the <s> token (global row 0) and any out-of-range padded rows of
    # a ragged last tile from the spatial max.
    rows = jax.lax.broadcasted_iota(jnp.int32, (seq_tile, 1), 0) + s * seq_tile
    keep = jnp.logical_and(rows != 0, rows < seq_len)
    scores = jnp.where(keep, scores, -jnp.inf)

    # Running spatial max (MaxMinPool1d with kmax=1, kmin=0).
    o_ref[0] = jnp.maximum(o_ref[0], jnp.max(scores, axis=0, keepdims=True))


# ---------------------------------------------------------------------------
# Wrapper: fold ClassWisePool + bias into the weights, tile over (B, S)
# ---------------------------------------------------------------------------
def token_zero_shot_head(input_ids, attention_mask, x_embed, conv_w, conv_b,
                         num_labels, num_maps, *, seq_tile=256,
                         compute_dtype=jnp.bfloat16):
    """logits (B, num_labels) of the zero-shot token-classification head.

    input_ids, attention_mask : (B, S) int
    x_embed                   : (B, S, H)   roberta last_hidden_state
    conv_w                    : (C, H, 1)   nn.Conv1d(H, C, kernel_size=1) weight
    conv_b                    : (C,)        conv bias, C = num_labels * num_maps
    """
    B, S, H = x_embed.shape
    C = num_labels * num_maps
    L = num_labels

    # ClassWisePool(num_maps): channel l*num_maps + m -> class l, mean over maps.
    pool = jnp.repeat(jnp.eye(L, dtype=jnp.float32), num_maps, axis=0) / num_maps  # (C, L)
    w_t = conv_w.reshape(C, H).T.astype(jnp.float32)                               # (H, C)
    w_pooled = (w_t @ pool).astype(compute_dtype)                                  # (H, L)
    b_pooled = (conv_b.reshape(1, C).astype(jnp.float32) @ pool)                   # (1, L) f32

    x = x_embed.astype(compute_dtype)                      # stream activations in bf16
    ids3 = input_ids.astype(jnp.int32)[..., None]          # (B, S, 1)
    am3 = attention_mask.astype(jnp.int32)[..., None]      # (B, S, 1)

    ts = min(seq_tile, S)
    grid = (B, pl.cdiv(S, ts))

    kernel = functools.partial(_head_kernel, seq_len=S, seq_tile=ts)

    out = pl.pallas_call(
        kernel,
        out_shape=jax.ShapeDtypeStruct((B, 1, L), jnp.float32),
        grid_spec=pltpu.PrefetchScalarGridSpec(
            num_scalar_prefetch=0,
            grid=grid,
            in_specs=[
                pl.BlockSpec((1, ts, 1), lambda b, s: (b, s, 0)),   # input_ids
                pl.BlockSpec((1, ts, 1), lambda b, s: (b, s, 0)),   # attention_mask
                pl.BlockSpec((1, ts, H), lambda b, s: (b, s, 0)),   # x_embed (bf16)
                pl.BlockSpec((H, L), lambda b, s: (0, 0)),          # pooled weight (resident)
                pl.BlockSpec((1, L), lambda b, s: (0, 0)),          # pooled bias   (resident)
            ],
            out_specs=pl.BlockSpec((1, 1, L), lambda b, s: (b, 0, 0)),
        ),
        compiler_params=pltpu.CompilerParams(
            dimension_semantics=("parallel", "arbitrary")),
    )(ids3, am3, x, w_pooled, b_pooled)
    return out[:, 0, :]                                   # (B, L)


# ---------------------------------------------------------------------------
# Pure-JAX f32 reference (mirrors the PyTorch forward, eval mode, labels=None)
# ---------------------------------------------------------------------------
def reference(input_ids, attention_mask, x_embed, conv_w, conv_b, num_labels, num_maps):
    C = num_labels * num_maps
    H = x_embed.shape[-1]
    w_t = conv_w.reshape(C, H).T                                            # (H, C)
    mask = ((input_ids != 2).astype(jnp.int32)
            & attention_mask.astype(jnp.int32)).astype(x_embed.dtype)       # (B, S)
    x = (x_embed * mask[..., None])[:, 1:, :]                               # (B, T, H)
    conv = jnp.einsum("bth,hc->btc", x, w_t) + conv_b.reshape(1, 1, C)      # (B, T, C)
    B, T, _ = conv.shape
    avg = conv.reshape(B, T, num_labels, num_maps).mean(-1)                 # (B, T, L)
    return avg.max(axis=1)                                                  # (B, L)


if __name__ == "__main__":
    # Small, module-consistent shapes (embed_dim=768 stand-in H=64).
    B, S = 2, 16
    H = 64
    num_labels, num_maps = 4, 2
    C = num_labels * num_maps
    vocab = 50

    key = jax.random.PRNGKey(0)
    k_emb, k_ids, k_w, k_b = jax.random.split(key, 4)

    # --- deterministic "inputs" -------------------------------------------
    input_ids = jax.random.randint(k_ids, (B, S), 3, vocab, dtype=jnp.int32)
    input_ids = input_ids.at[:, 0].set(0)          # <s>
    input_ids = input_ids.at[0, S - 1].set(2)      # </s>
    input_ids = input_ids.at[1, 11].set(2)         # </s>
    input_ids = input_ids.at[1, 12:].set(1)        # <pad>
    attention_mask = jnp.ones((B, S), dtype=jnp.int32)
    attention_mask = attention_mask.at[1, 12:].set(0)

    # --- deterministic "parameters" ---------------------------------------
    # Stand-in for the RoBERTa encoder output (see TODO above): embedding lookup.
    emb_table = jax.random.normal(k_emb, (vocab, H), dtype=jnp.float32) * 0.5
    x_embed = emb_table[input_ids]                                   # (B, S, H) f32

    # nn.Conv1d(H, C, kernel_size=1): weight (C, H, 1), bias (C,)
    conv_w = jax.random.normal(k_w, (C, H, 1), dtype=jnp.float32) * 0.02
    conv_b = jax.random.normal(k_b, (C,), dtype=jnp.float32) * 0.02

    # --- run kernel + check -------------------------------------------------
    logits = token_zero_shot_head(input_ids, attention_mask, x_embed, conv_w, conv_b,
                                  num_labels, num_maps, seq_tile=8)
    logits = jax.block_until_ready(logits)

    ref = reference(input_ids, attention_mask, x_embed, conv_w, conv_b,
                    num_labels, num_maps)
    assert logits.shape == (B, num_labels), logits.shape
    # bf16 activation/weight streaming -> loosened tolerance vs f32 reference.
    assert jnp.allclose(logits, ref, atol=1e-2, rtol=1e-2), (logits, ref)

    print("KERNEL_OK")
</pallas_src>

<mosaic_0001>
module attributes {stable_mosaic.version = 11 : i64} {
  func.func @_head_kernel(%arg0: i32, %arg1: i32, %arg2: memref<1x8x1xi32, #tpu.memory_space<vmem>>, %arg3: memref<1x8x1xi32, #tpu.memory_space<vmem>>, %arg4: memref<1x8x64xbf16, #tpu.memory_space<vmem>>, %arg5: memref<64x4xbf16, #tpu.memory_space<vmem>>, %arg6: memref<1x4xf32, #tpu.memory_space<vmem>>, %arg7: memref<1x1x4xf32, #tpu.memory_space<vmem>>) attributes {dimension_semantics = [#tpu.dimension_semantics<parallel>, #tpu.dimension_semantics<arbitrary>], iteration_bounds = array<i64: 2, 2>, scalar_prefetch = 0 : i64, scratch_operands = 0 : i64, tpu.core_type = #tpu.core_type<tc>, window_params = [{transform_indices = @transform_0, window_bounds = array<i64: 1, 8, 1>}, {transform_indices = @transform_1, window_bounds = array<i64: 1, 8, 1>}, {transform_indices = @transform_2, window_bounds = array<i64: 1, 8, 64>}, {pipeline_mode = #tpu.pipeline_mode<synchronous>, transform_indices = @transform_3, window_bounds = array<i64: 64, 4>}, {pipeline_mode = #tpu.pipeline_mode<synchronous>, transform_indices = @transform_4, window_bounds = array<i64: 1, 4>}, {transform_indices = @transform_5, window_bounds = array<i64: 1, 1, 4>}]} {
    %c0_i32 = arith.constant 0 : i32
    %0 = arith.cmpi eq, %arg1, %c0_i32 : i32
    %1 = arith.extui %0 : i1 to i32
    %c0_i32_0 = arith.constant 0 : i32
    %2 = arith.cmpi ne, %1, %c0_i32_0 : i32
    scf.if %2 {
      %cst_23 = arith.constant 0xFF800000 : f32
      %44 = vector.broadcast %cst_23 : f32 to vector<1x1x4xf32>
      %c0_24 = arith.constant 0 : index
      %c0_25 = arith.constant 0 : index
      %c0_26 = arith.constant 0 : index
      %45 = vector.load %arg7[%c0_24, %c0_25, %c0_26] : memref<1x1x4xf32, #tpu.memory_space<vmem>>, vector<1x1x4xf32>
      tpu.vector_store %arg7[%c0_24, %c0_25, %c0_26], %44 {strides = array<i32>} : memref<1x1x4xf32, #tpu.memory_space<vmem>>, vector<1x1x4xf32>,
    } else {
    }
    %c0 = arith.constant 0 : index
    %c0_1 = arith.constant 0 : index
    %c0_2 = arith.constant 0 : index
    %3 = vector.load %arg4[%c0, %c0_1, %c0_2] : memref<1x8x64xbf16, #tpu.memory_space<vmem>>, vector<1x8x64xbf16>
    %4 = vector.shape_cast %3 : vector<1x8x64xbf16> to vector<8x64xbf16>
    %c0_3 = arith.constant 0 : index
    %c0_4 = arith.constant 0 : index
    %5 = vector.load %arg5[%c0_3, %c0_4] : memref<64x4xbf16, #tpu.memory_space<vmem>>, vector<64x4xbf16>
    %cst = arith.constant dense<0.000000e+00> : vector<8x4xf32>
    %6 = tpu.matmul %4, %5, %cst {dimension_numbers = #tpu.dot_dimension_numbers<[1], [0], [0], [1], [0, 0, 1, 1], [], []>} : vector<8x64xbf16>, vector<64x4xbf16>, vector<8x4xf32> -> vector<8x4xf32>
    %c0_5 = arith.constant 0 : index
    %c0_6 = arith.constant 0 : index
    %c0_7 = arith.constant 0 : index
    %7 = vector.load %arg2[%c0_5, %c0_6, %c0_7] : memref<1x8x1xi32, #tpu.memory_space<vmem>>, vector<1x8x1xi32>
    %8 = vector.shape_cast %7 : vector<1x8x1xi32> to vector<8x1xi32>
    %c2_i32 = arith.constant 2 : i32
    %9 = vector.broadcast %c2_i32 : i32 to vector<8x1xi32>
    %10 = arith.cmpi ne, %8, %9 : vector<8x1xi32>
    %c0_8 = arith.constant 0 : index
    %c0_9 = arith.constant 0 : index
    %c0_10 = arith.constant 0 : index
    %11 = vector.load %arg3[%c0_8, %c0_9, %c0_10] : memref<1x8x1xi32, #tpu.memory_space<vmem>>, vector<1x8x1xi32>
    %12 = vector.shape_cast %11 : vector<1x8x1xi32> to vector<8x1xi32>
    %c0_i32_11 = arith.constant 0 : i32
    %13 = vector.broadcast %c0_i32_11 : i32 to vector<8x1xi32>
    %14 = arith.cmpi ne, %12, %13 : vector<8x1xi32>
    %15 = arith.andi %10, %14 : vector<8x1xi1>
    %16 = arith.extui %15 : vector<8x1xi1> to vector<8x1xi32>
    %17 = arith.sitofp %16 : vector<8x1xi32> to vector<8x1xf32>
    %18 = vector.broadcast %17 : vector<8x1xf32> to vector<8x4xf32>
    %19 = arith.mulf %6, %18 : vector<8x4xf32>
    %c0_12 = arith.constant 0 : index
    %c0_13 = arith.constant 0 : index
    %20 = vector.load %arg6[%c0_12, %c0_13] : memref<1x4xf32, #tpu.memory_space<vmem>>, vector<1x4xf32>
    %21 = vector.broadcast %20 : vector<1x4xf32> to vector<8x4xf32>
    %22 = arith.addf %19, %21 : vector<8x4xf32>
    %23 = tpu.iota {dimensions = array<i32: 0>} : vector<8x1xi32>
    %c8_i32 = arith.constant 8 : i32
    %24 = arith.muli %arg1, %c8_i32 : i32
    %25 = vector.broadcast %24 : i32 to vector<8x1xi32>
    %26 = arith.addi %23, %25 : vector<8x1xi32>
    %c0_i32_14 = arith.constant 0 : i32
    %27 = vector.broadcast %c0_i32_14 : i32 to vector<8x1xi32>
    %28 = arith.cmpi ne, %26, %27 : vector<8x1xi32>
    %c16_i32 = arith.constant 16 : i32
    %29 = vector.broadcast %c16_i32 : i32 to vector<8x1xi32>
    %30 = arith.cmpi slt, %26, %29 : vector<8x1xi32>
    %31 = arith.andi %28, %30 : vector<8x1xi1>
    %cst_15 = arith.constant 0xFF800000 : f32
    %32 = vector.shape_cast %31 : vector<8x1xi1> to vector<8x1xi1>
    %33 = vector.broadcast %32 : vector<8x1xi1> to vector<8x4xi1>
    %34 = vector.broadcast %cst_15 : f32 to vector<8x4xf32>
    %35 = arith.select %33, %22, %34 : vector<8x4xi1>, vector<8x4xf32>
    %c0_16 = arith.constant 0 : index
    %c0_17 = arith.constant 0 : index
    %c0_18 = arith.constant 0 : index
    %36 = vector.load %arg7[%c0_16, %c0_17, %c0_18] : memref<1x1x4xf32, #tpu.memory_space<vmem>>, vector<1x1x4xf32>
    %37 = vector.shape_cast %36 : vector<1x1x4xf32> to vector<1x4xf32>
    %cst_19 = arith.constant dense<0xFF800000> : vector<4xf32>
    %38 = vector.multi_reduction <maximumf>, %35, %cst_19 [0] : vector<8x4xf32> to vector<4xf32>
    %39 = vector.shape_cast %38 : vector<4xf32> to vector<1x4xf32>
    %40 = arith.maximumf %37, %39 : vector<1x4xf32>
    %c0_20 = arith.constant 0 : index
    %c0_21 = arith.constant 0 : index
    %c0_22 = arith.constant 0 : index
    %41 = vector.load %arg7[%c0_20, %c0_21, %c0_22] : memref<1x1x4xf32, #tpu.memory_space<vmem>>, vector<1x1x4xf32>
    %42 = vector.shape_cast %41 : vector<1x1x4xf32> to vector<1x4xf32>
    %43 = vector.shape_cast %40 : vector<1x4xf32> to vector<1x1x4xf32>
    tpu.vector_store %arg7[%c0_20, %c0_21, %c0_22], %43 {strides = array<i32>} : memref<1x1x4xf32, #tpu.memory_space<vmem>>, vector<1x1x4xf32>,
    return
  }
  func.func @transform_0(%arg0: i32, %arg1: i32) -> (i32, i32, i32) {
    %c0_i32 = arith.constant 0 : i32
    %c0_i32_0 = arith.constant 0 : i32
    return %arg0, %arg1, %c0_i32 : i32, i32, i32
  }
  func.func @transform_1(%arg0: i32, %arg1: i32) -> (i32, i32, i32) {
    %c0_i32 = arith.constant 0 : i32
    %c0_i32_0 = arith.constant 0 : i32
    return %arg0, %arg1, %c0_i32 : i32, i32, i32
  }
  func.func @transform_2(%arg0: i32, %arg1: i32) -> (i32, i32, i32) {
    %c0_i32 = arith.constant 0 : i32
    %c0_i32_0 = arith.constant 0 : i32
    return %arg0, %arg1, %c0_i32 : i32, i32, i32
  }
  func.func @transform_3(%arg0: i32, %arg1: i32) -> (i32, i32) {
    %c0_i32 = arith.constant 0 : i32
    %c0_i32_0 = arith.constant 0 : i32
    %c0_i32_1 = arith.constant 0 : i32
    return %c0_i32, %c0_i32_0 : i32, i32
  }
  func.func @transform_4(%arg0: i32, %arg1: i32) -> (i32, i32) {
    %c0_i32 = arith.constant 0 : i32
    %c0_i32_0 = arith.constant 0 : i32
    %c0_i32_1 = arith.constant 0 : i32
    return %c0_i32, %c0_i32_0 : i32, i32
  }
  func.func @transform_5(%arg0: i32, %arg1: i32) -> (i32, i32, i32) {
    %c0_i32 = arith.constant 0 : i32
    %c0_i32_0 = arith.constant 0 : i32
    %c0_i32_1 = arith.constant 0 : i32
    return %arg0, %c0_i32, %c0_i32_0 : i32, i32, i32
  }
}

</mosaic_0001>

<llo_original>
// kernel: tpu_custom_call.1
$region0: #{tpu_custom_call.1}
  #allocation0 [shape = 'u32[]', space=smem, size = 0x4, offset = 0x4, fixed_abs, tag = 'smem constant byte address 0x4 - core index']
  #allocation1 [shape = 'u32[72,128]{1,0:T(1,128)}', space=vmem, size = 0x9000, scoped, tag = 'internal scratch']
  %s0 = inlined_call_operand.vmem [shape: s32[2,16,1], index: 0, kind: input, shape index: {}]
  %s1 = inlined_call_operand.vmem [shape: s32[2,16,1], index: 1, kind: input, shape index: {}]
  %s2 = inlined_call_operand.vmem [shape: bf16[2,16,64], index: 2, kind: input, shape index: {}]
  %s3 = inlined_call_operand.vmem [shape: bf16[64,4], index: 3, kind: input, shape index: {}]
  %s4 = inlined_call_operand.vmem [shape: f32[1,4], index: 4, kind: input, shape index: {}]
  %s5 = inlined_call_operand.hbm [shape: f32[2,1,4], index: 5, kind: output, shape index: {}]
  %s6 = sld [smem:[#allocation0]]
  $region57: #{tpu_custom_call.1} parent=0
    _
  %s8 = ssub.s32 1, %s6
  %s9 = scalar_select 0, %s8, %s6
  $region1: #{tpu_custom_call.1} parent=0
    #allocation2 [shape = 'u8[1024]{0}', space=vmem, size = 0x400, scoped, tag = 'output window, operand 0']
    #allocation3 [shape = 's32[2]{0}', space=sflag, size = 0x8, scoped, tag = 'scoped memory for tpu_custom_call.1']
    %10 = vsyncpa [#allocation3], 0
    %s11 = scalar_lea.sflag [#allocation3], 1
    %12 = vsyncpa %s11, 0
    loop: start=0, step=1, limit=6
    $region2: #{tpu_custom_call.1} parent=1 // loop_pre_header
      _
    $region3: #{tpu_custom_call.1} parent=1 // loop_header
      %s14 = sphi 0, %s18
      %p15 = scmp.ge.s32.totalorder %s14, 6
      %s21 = sphi 0, %s33
      %s22 = sphi 0, %s29
      %s23 = sphi 0, %s21
      %s24 = sphi 0, %s22
      %s25 = sphi 0, %s23
      %s26 = sphi 0, %s24
      %s38 = sphi 0, %s40
      %s41 = sphi 0, %s38
      %s42 = sphi 0, %s41
      %s58 = sphi 0, %s42
      %s66 = sphi 0, %s68
      %s69 = sphi 0, %s66
      %s70 = sphi 0, %s69
      %s86 = sphi 0, %s70
      %s94 = sphi 0, %s96
      %s97 = sphi 0, %s94
      %s98 = sphi 0, %s97
      %s114 = sphi 0, %s98
      %s118 = sphi 0, %s118
      %s120 = sphi 0, %s118
      %s121 = sphi 0, %s120
      %s135 = sphi 0, %s121
      %s139 = sphi 0, %s139
      %s141 = sphi 0, %s139
      %s142 = sphi 0, %s141
      %s156 = sphi 0, %s142
      %s162 = sphi 0, %s164
      %s165 = sphi 0, %s162
      %s166 = sphi 0, %s165
      %s182 = sphi 0, %s166
    $region4: #{tpu_custom_call.1} parent=1 // loop_header_branch
      %17 = sbr.rel (%p15) target = $region8
    $region5: #{tpu_custom_call.1} parent=1 // loop_body
      %s19 = ssub.s32 %s14, 1
      %s20 = ssub.s32 %s14, 2
      %s27 = sadd.s32 1, %s22
      %p28 = scmp.ge.s32.totalorder %s27, 2
      %s29 = scalar_select %p28, 0, %s27
      %s30 = sadd.s32 1, %s21
      %s31 = scalar_select %p28, %s30, %s21
      %p32 = scmp.ge.s32.totalorder %s31, 2
      %s33 = scalar_select %p32, 0, %s31
      %s34 = ssub.s32 %s21, %s33
      %s35 = ssub.s32 %s22, %s29
      %s36 = sor.u32 %s34, %s35
      %p37 = scmp.eq.s32.totalorder %s36, 0
      %s39 = sadd.s32 %s38, 1
      %s40 = scalar_select %p37, %s38, %s39
      %p43 = pneg %p37
      %p44 = scmp.eq.s32.totalorder %s14, 3
      %p45 = por %p43, %p44
      %p46 = scmp.ne.s32.totalorder %s38, %s41
      %p47 = scmp.eq.s32.totalorder %s14, 0
      %p48 = por %p46, %p47
      %p49 = scmp.ne.s32.totalorder %s38, %s41
      %p50 = scmp.eq.s32.totalorder %s19, 3
      %p51 = por %p49, %p50
      %p52 = scmp.ne.s32.totalorder %s41, %s42
      %p53 = scmp.eq.s32.totalorder %s19, 0
      %p54 = por %p52, %p53
      %p55 = scmp.ne.s32.totalorder %s41, %s42
      %p56 = scmp.eq.s32.totalorder %s20, 3
      %p57 = por %p55, %p56
      %p59 = scmp.ne.s32.totalorder %s42, %s58
      %p60 = scmp.eq.s32.totalorder %s20, 0
      %p61 = por %p59, %p60
      %s62 = ssub.s32 %s21, %s33
      %s63 = ssub.s32 %s22, %s29
      %s64 = sor.u32 %s62, %s63
      %p65 = scmp.eq.s32.totalorder %s64, 0
      %s67 = sadd.s32 %s66, 1
      %s68 = scalar_select %p65, %s66, %s67
      %p71 = pneg %p65
      %p72 = scmp.eq.s32.totalorder %s14, 3
      %p73 = por %p71, %p72
      %p74 = scmp.ne.s32.totalorder %s66, %s69
      %p75 = scmp.eq.s32.totalorder %s14, 0
      %p76 = por %p74, %p75
      %p77 = scmp.ne.s32.totalorder %s66, %s69
      %p78 = scmp.eq.s32.totalorder %s19, 3
      %p79 = por %p77, %p78
      %p80 = scmp.ne.s32.totalorder %s69, %s70
      %p81 = scmp.eq.s32.totalorder %s19, 0
      %p82 = por %p80, %p81
      %p83 = scmp.ne.s32.totalorder %s69, %s70
      %p84 = scmp.eq.s32.totalorder %s20, 3
      %p85 = por %p83, %p84
      %p87 = scmp.ne.s32.totalorder %s70, %s86
      %p88 = scmp.eq.s32.totalorder %s20, 0
      %p89 = por %p87, %p88
      %s90 = ssub.s32 %s21, %s33
      %s91 = ssub.s32 %s22, %s29
      %s92 = sor.u32 %s90, %s91
      %p93 = scmp.eq.s32.totalorder %s92, 0
      %s95 = sadd.s32 %s94, 1
      %s96 = scalar_select %p93, %s94, %s95
      %p99 = pneg %p93
      %p100 = scmp.eq.s32.totalorder %s14, 3
      %p101 = por %p99, %p100
      %p102 = scmp.ne.s32.totalorder %s94, %s97
      %p103 = scmp.eq.s32.totalorder %s14, 0
      %p104 = por %p102, %p103
      %p105 = scmp.ne.s32.totalorder %s94, %s97
      %p106 = scmp.eq.s32.totalorder %s19, 3
      %p107 = por %p105, %p106
      %p108 = scmp.ne.s32.totalorder %s97, %s98
      %p109 = scmp.eq.s32.totalorder %s19, 0
      %p110 = por %p108, %p109
      %p111 = scmp.ne.s32.totalorder %s97, %s98
      %p112 = scmp.eq.s32.totalorder %s20, 3
      %p113 = por %p111, %p112
      %p115 = scmp.ne.s32.totalorder %s98, %s114
      %p116 = scmp.eq.s32.totalorder %s20, 0
      %p117 = por %p115, %p116
      %s119 = sadd.s32 %s118, 1
      %p122 = scmp.eq.s32.totalorder %s14, 3
      %p123 = scmp.ne.s32.totalorder %s118, %s120
      %p124 = scmp.eq.s32.totalorder %s14, 0
      %p125 = por %p123, %p124
      %p126 = scmp.ne.s32.totalorder %s118, %s120
      %p127 = scmp.eq.s32.totalorder %s19, 3
      %p128 = por %p126, %p127
      %p129 = scmp.ne.s32.totalorder %s120, %s121
      %p130 = scmp.eq.s32.totalorder %s19, 0
      %p131 = por %p129, %p130
      %p132 = scmp.ne.s32.totalorder %s120, %s121
      %p133 = scmp.eq.s32.totalorder %s20, 3
      %p134 = por %p132, %p133
      %p136 = scmp.ne.s32.totalorder %s121, %s135
      %p137 = scmp.eq.s32.totalorder %s20, 0
      %p138 = por %p136, %p137
      %s140 = sadd.s32 %s139, 1
      %p143 = scmp.eq.s32.totalorder %s14, 3
      %p144 = scmp.ne.s32.totalorder %s139, %s141
      %p145 = scmp.eq.s32.totalorder %s14, 0
      %p146 = por %p144, %p145
      %p147 = scmp.ne.s32.totalorder %s139, %s141
      %p148 = scmp.eq.s32.totalorder %s19, 3
      %p149 = por %p147, %p148
      %p150 = scmp.ne.s32.totalorder %s141, %s142
      %p151 = scmp.eq.s32.totalorder %s19, 0
      %p152 = por %p150, %p151
      %p153 = scmp.ne.s32.totalorder %s141, %s142
      %p154 = scmp.eq.s32.totalorder %s20, 3
      %p155 = por %p153, %p154
      %p157 = scmp.ne.s32.totalorder %s142, %s156
      %p158 = scmp.eq.s32.totalorder %s20, 0
      %p159 = por %p157, %p158
      %s160 = ssub.s32 %s21, %s33
      %p161 = scmp.eq.s32.totalorder %s160, 0
      %s163 = sadd.s32 %s162, 1
      %s164 = scalar_select %p161, %s162, %s163
      %p167 = pneg %p161
      %p168 = scmp.eq.s32.totalorder %s14, 3
      %p169 = por %p167, %p168
      %p170 = scmp.ne.s32.totalorder %s162, %s165
      %p171 = scmp.eq.s32.totalorder %s14, 0
      %p172 = por %p170, %p171
      %p173 = scmp.ne.s32.totalorder %s162, %s165
      %p174 = scmp.eq.s32.totalorder %s19, 3
      %p175 = por %p173, %p174
      %p176 = scmp.ne.s32.totalorder %s165, %s166
      %p177 = scmp.eq.s32.totalorder %s19, 0
      %p178 = por %p176, %p177
      %p179 = scmp.ne.s32.totalorder %s165, %s166
      %p180 = scmp.eq.s32.totalorder %s20, 3
      %p181 = por %p179, %p180
      %p183 = scmp.ne.s32.totalorder %s166, %s182
      %p184 = scmp.eq.s32.totalorder %s20, 0
      %p185 = por %p183, %p184
      %p186 = scmp.le.s32.totalorder 1, %s14
      %p187 = scmp.lt.s32.totalorder %s14, 5
      %p188 = pnand %p186, %p187
      %p189 = pneg %p188
      // Predicated region
      $region9: #{tpu_custom_call.1} parent=5 // pred_check
        _
      $region10: #{tpu_custom_call.1} parent=5 // pred_check_branch
        %191 = sbr.rel (%p188) target = $region12
      $region11: #{tpu_custom_call.1} parent=5 // pred_region
        %s192 = ssub.s32 %s14, 1
        // Predicated region
        $region13: #{tpu_custom_call.1} parent=11 // pred_check
          %p193 = pneg %p131
        $region14: #{tpu_custom_call.1} parent=11 // pred_check_branch
          %195 = sbr.rel (%p193) target = $region16
        $region15: #{tpu_custom_call.1} parent=11 // pred_region
          _
        $region16: #{tpu_custom_call.1} parent=11 // pred_fallthru
          _
        // Predicated region
        $region17: #{tpu_custom_call.1} parent=11 // pred_check
          %p196 = pneg %p152
        $region18: #{tpu_custom_call.1} parent=11 // pred_check_branch
          %198 = sbr.rel (%p196) target = $region20
        $region19: #{tpu_custom_call.1} parent=11 // pred_region
          _
        $region20: #{tpu_custom_call.1} parent=11 // pred_fallthru
          _
      $region12: #{tpu_custom_call.1} parent=5 // pred_fallthru
        _
      %p199 = scmp.lt.s32.totalorder %s14, 4
      // Predicated region
      $region21: #{tpu_custom_call.1} parent=5 // pred_check
        %p200 = pneg %p199
      $region22: #{tpu_custom_call.1} parent=5 // pred_check_branch
        %202 = sbr.rel (%p200) target = $region24
      $region23: #{tpu_custom_call.1} parent=5 // pred_region
        // Predicated region
        $region25: #{tpu_custom_call.1} parent=23 // pred_check
          %p203 = pneg %p48
        $region26: #{tpu_custom_call.1} parent=23 // pred_check_branch
          %205 = sbr.rel (%p203) target = $region28
        $region27: #{tpu_custom_call.1} parent=23 // pred_region
          %p206 = scmp.lt.s32.totalorder %s21, 1
          %s207 = scalar_select %p206, %s21, 1
          %p208 = scmp.lt.s32.totalorder %s22, 1
          %s209 = scalar_select %p208, %s22, 1
          %s210 = smul.addr %s207, 2
          %s211 = sadd.s32 %s209, %s210
          %s212 = smul.addr %s211, 8
          %s213 = scalar_lea.vmem %s0, %s212
        $region28: #{tpu_custom_call.1} parent=23 // pred_fallthru
          _
        // Predicated region
        $region29: #{tpu_custom_call.1} parent=23 // pred_check
          %p214 = pneg %p76
        $region30: #{tpu_custom_call.1} parent=23 // pred_check_branch
          %216 = sbr.rel (%p214) target = $region32
        $region31: #{tpu_custom_call.1} parent=23 // pred_region
          %p217 = scmp.lt.s32.totalorder %s21, 1
          %s218 = scalar_select %p217, %s21, 1
          %p219 = scmp.lt.s32.totalorder %s22, 1
          %s220 = scalar_select %p219, %s22, 1
          %s221 = smul.addr %s218, 2
          %s222 = sadd.s32 %s220, %s221
          %s223 = smul.addr %s222, 8
          %s224 = scalar_lea.vmem %s1, %s223
        $region32: #{tpu_custom_call.1} parent=23 // pred_fallthru
          _
        // Predicated region
        $region33: #{tpu_custom_call.1} parent=23 // pred_check
          %p225 = pneg %p104
        $region34: #{tpu_custom_call.1} parent=23 // pred_check_branch
          %227 = sbr.rel (%p225) target = $region36
        $region35: #{tpu_custom_call.1} parent=23 // pred_region
          %p228 = scmp.lt.s32.totalorder %s21, 1
          %s229 = scalar_select %p228, %s21, 1
          %p230 = scmp.lt.s32.totalorder %s22, 1
          %s231 = scalar_select %p230, %s22, 1
          %s232 = smul.addr %s229, 2
          %s233 = sadd.s32 %s231, %s232
          %s234 = smul.addr %s233, 4
          %s235 = scalar_lea.vmem %s2, %s234
        $region36: #{tpu_custom_call.1} parent=23 // pred_fallthru
          _
      $region24: #{tpu_custom_call.1} parent=5 // pred_fallthru
        _
      %p236 = scmp.le.s32.totalorder 1, %s14
      %p237 = scmp.lt.s32.totalorder %s14, 5
      %p238 = pnand %p236, %p237
      %p239 = pneg %p238
      // Predicated region
      $region37: #{tpu_custom_call.1} parent=5 // pred_check
        _
      $region38: #{tpu_custom_call.1} parent=5 // pred_check_branch
        %241 = sbr.rel (%p238) target = $region40
      $region39: #{tpu_custom_call.1} parent=5 // pred_region
        %s242 = ssub.s32 %s14, 1
        %p243 = scmp.lt.s32.totalorder %s23, 1
        %s244 = scalar_select %p243, %s23, 1
        %p245 = scmp.lt.s32.totalorder %s24, 1
        %s246 = scalar_select %p245, %s24, 1
        %s247 = smul.addr %s244, 2
        %s248 = sadd.s32 %s246, %s247
        %s249 = smul.addr %s248, 8
        %s250 = scalar_lea.vmem %s0, %s249
        %p251 = pneg %p54
        %p252 = pneg %p51
        %p253 = scmp.lt.s32.totalorder %s23, 1
        %s254 = scalar_select %p253, %s23, 1
        %p255 = scmp.lt.s32.totalorder %s24, 1
        %s256 = scalar_select %p255, %s24, 1
        %s257 = smul.addr %s254, 2
        %s258 = sadd.s32 %s256, %s257
        %s259 = smul.addr %s258, 8
        %s260 = scalar_lea.vmem %s1, %s259
        %p261 = pneg %p82
        %p262 = pneg %p79
        %p263 = scmp.lt.s32.totalorder %s23, 1
        %s264 = scalar_select %p263, %s23, 1
        %p265 = scmp.lt.s32.totalorder %s24, 1
        %s266 = scalar_select %p265, %s24, 1
        %s267 = smul.addr %s264, 2
        %s268 = sadd.s32 %s266, %s267
        %s269 = smul.addr %s268, 4
        %s270 = scalar_lea.vmem %s2, %s269
        %p271 = pneg %p110
        %p272 = pneg %p107
        %p273 = pneg %p131
        %p274 = pneg %p128
        %p275 = pneg %p152
        %p276 = pneg %p149
        %p277 = pneg %p178
        %p278 = pneg %p175
        %s279 = sand.u32 %s165, 1
        %s280 = scalar_lea.sflag [#allocation3], %s279
        %s281 = sand.u32 %s165, 1
        %s282 = scalar_lea.vmem [#allocation2], %s281
        %p283 = scmp.lt.s32.totalorder %s23, 1
        %s284 = scalar_select %p283, %s23, 1
        %p285 = scmp.lt.s32.totalorder %s24, 1
        %s286 = scalar_select %p285, %s24, 1
        %s287 = smul.addr %s284, 2
        %s288 = sadd.s32 %s286, %s287
        %s289 = smul.addr %s288, 8
        %s290 = scalar_lea.vmem %s0, %s289
        %p291 = scmp.lt.s32.totalorder %s23, 1
        %s292 = scalar_select %p291, %s23, 1
        %p293 = scmp.lt.s32.totalorder %s24, 1
        %s294 = scalar_select %p293, %s24, 1
        %s295 = smul.addr %s292, 2
        %s296 = sadd.s32 %s294, %s295
        %s297 = smul.addr %s296, 8
        %s298 = scalar_lea.vmem %s1, %s297
        %p299 = scmp.lt.s32.totalorder %s23, 1
        %s300 = scalar_select %p299, %s23, 1
        %p301 = scmp.lt.s32.totalorder %s24, 1
        %s302 = scalar_select %p301, %s24, 1
        %s303 = smul.addr %s300, 2
        %s304 = sadd.s32 %s302, %s303
        %s305 = smul.addr %s304, 4
        %s306 = scalar_lea.vmem %s2, %s305
        %p308 = scmp.eq.s32.totalorder %s24, 0
        // Predicated region
        $region41: #{tpu_custom_call.1} parent=39 // pred_check
          %p309 = pneg %p308
        $region42: #{tpu_custom_call.1} parent=39 // pred_check_branch
          %311 = sbr.rel (%p309) target = $region44
        $region43: #{tpu_custom_call.1} parent=39 // pred_region
          %vm312 = vcmask 24576
          %313 = vst.msk [vmem:[%s282] sm:$0x1] %vm312, -inf
        $region44: #{tpu_custom_call.1} parent=39 // pred_fallthru
          _
        %v314 = vld [vmem:[%s306] sm:$0xf]
        %v315 = vld [vmem:[%s3] sm:$0xf]
        %v316 = vld [vmem:[%s3 + $0x4] sm:$0xf]
        %v317 = vld [vmem:[%s3 + $0x8] sm:$0xf]
        %v318 = vld [vmem:[%s3 + $0xc] sm:$0xf]
        %v319 = vld [vmem:[%s3 + $0x10] sm:$0xf]
        %v320 = vld [vmem:[%s3 + $0x14] sm:$0xf]
        %v321 = vld [vmem:[%s3 + $0x18] sm:$0xf]
        %v322 = vld [vmem:[%s3 + $0x1c] sm:$0xf]
        %v331 = vunpack.c.l.b16 %v315
        %v332 = vunpack.c.l.b16 %v316
        %v333 = vunpack.c.l.b16 %v317
        %v334 = vunpack.c.l.b16 %v318
        %v335 = vunpack.c.l.b16 %v319
        %v336 = vunpack.c.l.b16 %v320
        %v337 = vunpack.c.l.b16 %v321
        %v338 = vunpack.c.l.b16 %v322
        %v339 = vpack.c.b16 %v332, %v331
        %v340 = vpack.c.b16 %v334, %v333
        %v341 = vpack.c.b16 %v336, %v335
        %v342 = vpack.c.b16 %v338, %v337
        %vm347 = vcmask 523264
        %v349 = vsel %vm347, %v314, 0
        %351 = vmatpush.bf16.msra.mxu0 0
        %352 = vmatpush.bf16.msra.mxu0 0
        %353 = vmatpush.bf16.msra.mxu0 0
        %354 = vmatpush.bf16.msra.mxu0 0
        %355 = vmatpush.bf16.msra.mxu0 %v342
        %356 = vmatpush.bf16.msra.mxu0 %v341
        %357 = vmatpush.bf16.msra.mxu0 %v340
        %358 = vmatpush.bf16.msra.mxu0 %v339
        %359 = vmatmul.bf16.gmra.mxu0 %v349
        %v360 = vpop.f32.mrf.mxu0
        %v361 = vadd.f32 0.0, %v360
        %v362 = vpop.f32.mrf.mxu0
        %363 = vdwg.mxu0
        %v364 = vld [vmem:[%s290] sm:$0xff]
        %vm365 = vcmp.ne.s32.totalorder %v364, 2
        %v366 = vld [vmem:[%s298] sm:$0xff]
        %vm367 = vcmp.ne.s32.totalorder %v366, 0
        %vm368 = vmand %vm365, %vm367
        %v369 = vsel %vm368, 1, 0
        %v370 = vcvt.s32.f32 %v369
        %372 = vset.pattern.permute.xlu0 0
        %373 = vperm.xlu0 %372, %v370
        %v374 = vpop.permute.xlu0 %373
        %v376 = vmul.f32 %v361, %v374
        %v377 = vld [vmem:[%s4] sm:$0x1]
        %v379 = vperm.slane %v377, 0
        %v381 = vadd.f32 %v376, %v379
        %v382 = vlaneseq
        %v383 = vshrl.u32 %v382, 7
        %s384 = smul.u32 %s24, 8
        %v385 = vstv %s384
        %v386 = vadd.s32 %v383, %v385
        %vm387 = vcmp.ne.s32.totalorder %v386, 0
        %vm388 = vcmp.lt.s32.totalorder %v386, 16
        %vm389 = vmand %vm387, %vm388
        %v390 = vsel %vm389, 1, 0
        %vm391 = vcmp.eq.s32.totalorder %v390, 1
        %v392 = vsel %vm391, %v381, -inf
        %v393 = vld [vmem:[%s282] sm:$0x1]
        %vm394 = vcmask 31744
        %v395 = vsel %vm394, %v392, -inf
        %v396 = vrot.slane %v395, 4
        %v397 = vmax.f32 %v395, %v396
        %v398 = vrot.slane %v397, 2
        %v399 = vmax.f32 %v397, %v398
        %v400 = vrot.slane %v399, 1
        %v401 = vmax.f32 %v399, %v400
        %v402 = vmax.f32 %v393, %v401
        %vm403 = vcmask 24576
        %404 = vst.msk [vmem:[%s282] sm:$0x1] %vm403, %v402
        %s405 = sand.u32 %s165, 1
        %s406 = scalar_lea.sflag [#allocation3], %s405
        %s407 = sand.u32 %s165, 1
        %s408 = scalar_lea.vmem [#allocation2], %s407
        // Predicated region
        $region45: #{tpu_custom_call.1} parent=39 // pred_check
          %p409 = pneg %p175
        $region46: #{tpu_custom_call.1} parent=39 // pred_check_branch
          %411 = sbr.rel (%p409) target = $region48
        $region47: #{tpu_custom_call.1} parent=39 // pred_region
          %413 = vsyncadd %s406, 0
          %s414 = scalar_lea.hbm %s5, %s23
          %s416 = sshll.u32 %s408, 4
          %s417 = int_to_ptr.vmem [resolvable:$true] %s416
          %s418 = sshll.u32 %s414, 4
          %s419 = int_to_ptr.hbm [resolvable:$true] %s418
          %421 = dma.vmem_to_hbm [thread:$0]  %s417, 16, %s419, %s406
        $region48: #{tpu_custom_call.1} parent=39 // pred_fallthru
          _
      $region40: #{tpu_custom_call.1} parent=5 // pred_fallthru
        _
      %p422 = scmp.le.s32.totalorder 2, %s14
      // Predicated region
      $region49: #{tpu_custom_call.1} parent=5 // pred_check
        %p423 = pneg %p422
      $region50: #{tpu_custom_call.1} parent=5 // pred_check_branch
        %425 = sbr.rel (%p423) target = $region52
      $region51: #{tpu_custom_call.1} parent=5 // pred_region
        %s426 = ssub.s32 %s14, 2
        // Predicated region
        $region53: #{tpu_custom_call.1} parent=51 // pred_check
          %p427 = pneg %p181
        $region54: #{tpu_custom_call.1} parent=51 // pred_check_branch
          %429 = sbr.rel (%p427) target = $region56
        $region55: #{tpu_custom_call.1} parent=51 // pred_region
          %s430 = sand.u32 %s166, 1
          %s431 = scalar_lea.sflag [#allocation3], %s430
          %s432 = sand.u32 %s166, 1
          %s433 = scalar_lea.vmem [#allocation2], %s432
          %435 = dma.done %s431, 16
        $region56: #{tpu_custom_call.1} parent=51 // pred_fallthru
          _
      $region52: #{tpu_custom_call.1} parent=5 // pred_fallthru
        _
    $region6: #{tpu_custom_call.1} parent=1 // loop_footer
      %s18 = sadd.s32 1, %s14
    $region7: #{tpu_custom_call.1} parent=1 // loop_footer_branch
      %13 = sbr.rel target = $region3
    $region8: #{tpu_custom_call.1} parent=1 // loop_exit
      _
    %436 = vsyncpa [#allocation3], 1
    %s437 = scalar_lea.sflag [#allocation3], 1
    %438 = vsyncpa %s437, 1

</llo_original>
